<compile_context>
chip_gen: v5e
topology: v5e:2x2
jax: 0.10.0
libtpu: 0.0.40
codegen_flags: <defaults>
</compile_context>

<pallas_src>
import jax
import jax.numpy as jnp
from jax.experimental import pallas as pl
from jax.experimental.pallas import tpu as pltpu


def _round_up(n, m):
    return ((n + m - 1) // m) * m


def valuenet_kernel(x_ref, w1_ref, b1_ref, w2_ref, b2_ref, o_ref):
    # fc1 on the MXU (f32 accumulation); bias + ReLU on the VPU.
    h = jnp.dot(x_ref[...], w1_ref[...], preferred_element_type=jnp.float32)
    h = jnp.maximum(h + b1_ref[...], 0.0)                 # (TILE_B, H)
    # fc2 on VPU (multiply) + XLU (lane reduction); b2 is an SMEM scalar.
    v = jnp.sum(h * w2_ref[...], axis=-1, keepdims=True) + b2_ref[0, 0]
    o_ref[...] = v.astype(o_ref.dtype)


def value_net_forward(x, w1, b1, w2, b2, *, tile_b=512):
    """x: (B, state_dim) f32 -> (B, 1) f32.

    w1: (state_dim, hidden)  == fc1.weight.T
    b1: (hidden,)            == fc1.bias
    w2: (hidden, 1)          == fc2.weight.T
    b2: (1,)                 == fc2.bias
    """
    B, state_dim = x.shape
    hidden = w1.shape[1]

    # Batch tiling: multiple of 8 (f32 sublane); shrink for tiny batches,
    # pad the batch up to a whole number of tiles.
    tile_b = min(tile_b, _round_up(B, 8))
    b_pad = _round_up(B, tile_b)
    if b_pad != B:
        x = jnp.pad(x, ((0, b_pad - B), (0, 0)))

    # Tiny one-time parameter reshapes (outside the kernel, negligible).
    b1_row = b1.reshape(1, hidden)
    w2_row = w2.reshape(1, hidden)   # row layout -> VPU broadcast multiply
    b2_s = b2.reshape(1, 1)          # -> SMEM scalar

    grid = (b_pad // tile_b,)

    out = pl.pallas_call(
        valuenet_kernel,
        out_shape=jax.ShapeDtypeStruct((b_pad, 1), x.dtype),
        grid_spec=pltpu.PrefetchScalarGridSpec(
            num_scalar_prefetch=0,
            grid=grid,
            in_specs=[
                # x streams along the batch grid axis (double-buffered DMA).
                pl.BlockSpec((tile_b, state_dim), lambda i: (i, 0)),
                # Weights / biases: constant block index -> VMEM-resident.
                pl.BlockSpec((state_dim, hidden), lambda i: (0, 0)),
                pl.BlockSpec((1, hidden), lambda i: (0, 0)),
                pl.BlockSpec((1, hidden), lambda i: (0, 0)),
                # (1,1) bias scalar in SMEM: no padded VMEM tile / vreg load.
                pl.BlockSpec(memory_space=pltpu.MemorySpace.SMEM),
            ],
            out_specs=pl.BlockSpec((tile_b, 1), lambda i: (i, 0)),
        ),
        compiler_params=pltpu.CompilerParams(
            dimension_semantics=("parallel",),
        ),
    )(x, w1, b1_row, w2_row, b2_s)

    return out[:B]


def init_params(key, state_dim, hidden_dim):
    """Mimics nn.Linear's U(-1/sqrt(fan_in), 1/sqrt(fan_in)) init."""
    k1, k2, k3, k4 = jax.random.split(key, 4)
    lim1 = 1.0 / jnp.sqrt(jnp.float32(state_dim))
    lim2 = 1.0 / jnp.sqrt(jnp.float32(hidden_dim))
    w1 = jax.random.uniform(k1, (state_dim, hidden_dim), jnp.float32, -lim1, lim1)
    b1 = jax.random.uniform(k2, (hidden_dim,), jnp.float32, -lim1, lim1)
    w2 = jax.random.uniform(k3, (hidden_dim, 1), jnp.float32, -lim2, lim2)
    b2 = jax.random.uniform(k4, (1,), jnp.float32, -lim2, lim2)
    return w1, b1, w2, b2


if __name__ == "__main__":
    # CartPole: state_dim = 4; hidden_dim = 128 (as in the reference script).
    state_dim, hidden_dim, batch = 4, 128, 8

    key = jax.random.PRNGKey(0)
    kx, kp = jax.random.split(key)
    x = jax.random.normal(kx, (batch, state_dim), jnp.float32)
    w1, b1, w2, b2 = init_params(kp, state_dim, hidden_dim)

    out = value_net_forward(x, w1, b1, w2, b2)
    out = jax.block_until_ready(out)

    # Pure-JAX reference for sanity.
    ref = jnp.maximum(x @ w1 + b1, 0.0) @ w2 + b2
    assert out.shape == (batch, 1)
    assert jnp.allclose(out, ref, atol=1e-5, rtol=1e-5), (
        "max abs err = %g" % float(jnp.max(jnp.abs(out - ref))))

    print("KERNEL_OK")
</pallas_src>

<mosaic_0001>
module attributes {stable_mosaic.version = 11 : i64} {
  func.func @valuenet_kernel(%arg0: i32, %arg1: memref<8x4xf32, #tpu.memory_space<vmem>>, %arg2: memref<4x128xf32, #tpu.memory_space<vmem>>, %arg3: memref<1x128xf32, #tpu.memory_space<vmem>>, %arg4: memref<1x128xf32, #tpu.memory_space<vmem>>, %arg5: memref<1x1xf32, #tpu.memory_space<smem>>, %arg6: memref<8x1xf32, #tpu.memory_space<vmem>>) attributes {dimension_semantics = [#tpu.dimension_semantics<parallel>], iteration_bounds = array<i64: 1>, scalar_prefetch = 0 : i64, scratch_operands = 0 : i64, tpu.core_type = #tpu.core_type<tc>, window_params = [{transform_indices = @transform_0, window_bounds = array<i64: 8, 4>}, {pipeline_mode = #tpu.pipeline_mode<synchronous>, transform_indices = @transform_1, window_bounds = array<i64: 4, 128>}, {pipeline_mode = #tpu.pipeline_mode<synchronous>, transform_indices = @transform_2, window_bounds = array<i64: 1, 128>}, {pipeline_mode = #tpu.pipeline_mode<synchronous>, transform_indices = @transform_3, window_bounds = array<i64: 1, 128>}, {transform_indices = @transform_4, window_bounds = array<i64: 1, 1>}, {transform_indices = @transform_5, window_bounds = array<i64: 8, 1>}]} {
    %c0 = arith.constant 0 : index
    %c0_0 = arith.constant 0 : index
    %0 = vector.load %arg1[%c0, %c0_0] : memref<8x4xf32, #tpu.memory_space<vmem>>, vector<8x4xf32>
    %c0_1 = arith.constant 0 : index
    %c0_2 = arith.constant 0 : index
    %1 = vector.load %arg2[%c0_1, %c0_2] : memref<4x128xf32, #tpu.memory_space<vmem>>, vector<4x128xf32>
    %cst = arith.constant dense<0.000000e+00> : vector<8x128xf32>
    %2 = tpu.matmul %0, %1, %cst {dimension_numbers = #tpu.dot_dimension_numbers<[1], [0], [0], [1], [0, 0, 1, 1], [], []>} : vector<8x4xf32>, vector<4x128xf32>, vector<8x128xf32> -> vector<8x128xf32>
    %c0_3 = arith.constant 0 : index
    %c0_4 = arith.constant 0 : index
    %3 = vector.load %arg3[%c0_3, %c0_4] : memref<1x128xf32, #tpu.memory_space<vmem>>, vector<1x128xf32>
    %4 = vector.broadcast %3 : vector<1x128xf32> to vector<8x128xf32>
    %5 = arith.addf %2, %4 : vector<8x128xf32>
    %cst_5 = arith.constant 0.000000e+00 : f32
    %6 = vector.broadcast %cst_5 : f32 to vector<8x128xf32>
    %7 = arith.maximumf %5, %6 : vector<8x128xf32>
    %c0_6 = arith.constant 0 : index
    %c0_7 = arith.constant 0 : index
    %8 = vector.load %arg4[%c0_6, %c0_7] : memref<1x128xf32, #tpu.memory_space<vmem>>, vector<1x128xf32>
    %9 = vector.broadcast %8 : vector<1x128xf32> to vector<8x128xf32>
    %10 = arith.mulf %7, %9 : vector<8x128xf32>
    %cst_8 = arith.constant dense<0.000000e+00> : vector<8xf32>
    %11 = vector.multi_reduction <add>, %10, %cst_8 [1] : vector<8x128xf32> to vector<8xf32>
    %12 = vector.shape_cast %11 : vector<8xf32> to vector<8x1xf32>
    %c0_9 = arith.constant 0 : index
    %c0_10 = arith.constant 0 : index
    %13 = memref.load %arg5[%c0_9, %c0_10] : memref<1x1xf32, #tpu.memory_space<smem>>
    %14 = vector.broadcast %13 : f32 to vector<8x1xf32>
    %15 = arith.addf %12, %14 : vector<8x1xf32>
    %c0_11 = arith.constant 0 : index
    %c0_12 = arith.constant 0 : index
    %16 = vector.load %arg6[%c0_11, %c0_12] : memref<8x1xf32, #tpu.memory_space<vmem>>, vector<8x1xf32>
    tpu.vector_store %arg6[%c0_11, %c0_12], %15 {strides = array<i32>} : memref<8x1xf32, #tpu.memory_space<vmem>>, vector<8x1xf32>,
    return
  }
  func.func @transform_0(%arg0: i32) -> (i32, i32) {
    %c0_i32 = arith.constant 0 : i32
    %c0_i32_0 = arith.constant 0 : i32
    return %arg0, %c0_i32 : i32, i32
  }
  func.func @transform_1(%arg0: i32) -> (i32, i32) {
    %c0_i32 = arith.constant 0 : i32
    %c0_i32_0 = arith.constant 0 : i32
    %c0_i32_1 = arith.constant 0 : i32
    return %c0_i32, %c0_i32_0 : i32, i32
  }
  func.func @transform_2(%arg0: i32) -> (i32, i32) {
    %c0_i32 = arith.constant 0 : i32
    %c0_i32_0 = arith.constant 0 : i32
    %c0_i32_1 = arith.constant 0 : i32
    return %c0_i32, %c0_i32_0 : i32, i32
  }
  func.func @transform_3(%arg0: i32) -> (i32, i32) {
    %c0_i32 = arith.constant 0 : i32
    %c0_i32_0 = arith.constant 0 : i32
    %c0_i32_1 = arith.constant 0 : i32
    return %c0_i32, %c0_i32_0 : i32, i32
  }
  func.func @transform_4(%arg0: i32) -> (i32, i32) {
    %c0_i32 = arith.constant 0 : i32
    %c0_i32_0 = arith.constant 0 : i32
    %c0_i32_1 = arith.constant 0 : i32
    return %c0_i32, %c0_i32_0 : i32, i32
  }
  func.func @transform_5(%arg0: i32) -> (i32, i32) {
    %c0_i32 = arith.constant 0 : i32
    %c0_i32_0 = arith.constant 0 : i32
    return %arg0, %c0_i32 : i32, i32
  }
}

</mosaic_0001>

<llo_original>
// kernel: tpu_custom_call.1
$region0: #{tpu_custom_call.1}
  #allocation0 [shape = 'u32[]', space=smem, size = 0x4, offset = 0x4, fixed_abs, tag = 'smem constant byte address 0x4 - core index']
  #allocation1 [shape = 'u32[72,128]{1,0:T(1,128)}', space=vmem, size = 0x9000, scoped, tag = 'internal scratch']
  #allocation2 [shape = 'f32[1,1]{1,0:T(1,128)S(6)}', space=smem, size = 0x200, scoped, tag = 'scoped memory for tpu_custom_call.1']
  %s0 = inlined_call_operand.vmem [shape: f32[8,4], index: 0, kind: input, shape index: {}]
  %s1 = inlined_call_operand.vmem [shape: f32[4,128], index: 1, kind: input, shape index: {}]
  %s2 = inlined_call_operand.vmem [shape: f32[1,128], index: 2, kind: input, shape index: {}]
  %s3 = inlined_call_operand.vmem [shape: f32[1,128], index: 3, kind: input, shape index: {}]
  %s4 = inlined_call_operand.<no memory space> [shape: f32[1,1], index: 4, kind: input, shape index: {}]
  %s5 = inlined_call_operand.vmem [shape: f32[8,1], index: 5, kind: output, shape index: {}]
  %s6 = sld [smem:[#allocation0]]
  $region30: #{tpu_custom_call.1} parent=0
    _
  %s8 = ssub.s32 1, %s6
  %s9 = scalar_select 0, %s8, %s6
  %10 = sst [smem:[#allocation2]] %s4
  // Predicated region
  $region2: #{tpu_custom_call.1} parent=0 // pred_check
    _
  $region3: #{tpu_custom_call.1} parent=0 // pred_check_branch
    %12 = sbr.rel (0) target = $region5
  $region4: #{tpu_custom_call.1} parent=0 // pred_region
    _
  $region5: #{tpu_custom_call.1} parent=0 // pred_fallthru
    _
  // Predicated region
  $region6: #{tpu_custom_call.1} parent=0 // pred_check
    _
  $region7: #{tpu_custom_call.1} parent=0 // pred_check_branch
    %14 = sbr.rel (0) target = $region9
  $region8: #{tpu_custom_call.1} parent=0 // pred_region
    _
  $region9: #{tpu_custom_call.1} parent=0 // pred_fallthru
    _
  // Predicated region
  $region10: #{tpu_custom_call.1} parent=0 // pred_check
    _
  $region11: #{tpu_custom_call.1} parent=0 // pred_check_branch
    %16 = sbr.rel (0) target = $region13
  $region12: #{tpu_custom_call.1} parent=0 // pred_region
    _
  $region13: #{tpu_custom_call.1} parent=0 // pred_fallthru
    _
  // Predicated region
  $region14: #{tpu_custom_call.1} parent=0 // pred_check
    _
  $region15: #{tpu_custom_call.1} parent=0 // pred_check_branch
    %18 = sbr.rel (0) target = $region17
  $region16: #{tpu_custom_call.1} parent=0 // pred_region
    _
  $region17: #{tpu_custom_call.1} parent=0 // pred_fallthru
    _
  // Predicated region
  $region18: #{tpu_custom_call.1} parent=0 // pred_check
    _
  $region19: #{tpu_custom_call.1} parent=0 // pred_check_branch
    %20 = sbr.rel (0) target = $region21
  $region20: #{tpu_custom_call.1} parent=0 // pred_region
    _
  $region21: #{tpu_custom_call.1} parent=0 // pred_fallthru
    _
  %v21 = vld [vmem:[%s0] sm:$0xff]
  %v22 = vld [vmem:[%s1] sm:$0xf]
  %v23 = vld [vmem:[%s2] sm:$0x1]
  %v25 = vperm.slane %v23, 0
  %vm27 = vcmask 31744
  %v29 = vsel %vm27, %v21, 0
  %vm31 = vcmask 1043456
  %v33 = vsel %vm31, %v22, 0
  %35 = vmatpush.msra.mxu0 0.0
  %36 = vmatpush.msra.mxu0 0.0
  %37 = vmatpush.msra.mxu0 0.0
  %38 = vmatpush.msra.mxu0 0.0
  %39 = vmatpush.msra.mxu0 0.0
  %40 = vmatpush.msra.mxu0 0.0
  %41 = vmatpush.msra.mxu0 0.0
  %42 = vmatpush.msra.mxu0 0.0
  %43 = vmatpush.msra.mxu0 0.0
  %44 = vmatpush.msra.mxu0 0.0
  %45 = vmatpush.msra.mxu0 0.0
  %46 = vmatpush.msra.mxu0 0.0
  %47 = vmatpush.msra.mxu0 0.0
  %48 = vmatpush.msra.mxu0 0.0
  %49 = vmatpush.msra.mxu0 0.0
  %50 = vmatpush.msra.mxu0 %v33
  %51 = vmatmul.f32.gmra.mxu0 %v29
  %v52 = vpop.f32.mrf.mxu0
  %v53 = vadd.f32 %v25, %v52
  %54 = vdwg.mxu0
  %v55 = vmax.f32 %v53, 0.0
  %v56 = vld [vmem:[%s3] sm:$0x1]
  %v58 = vperm.slane %v56, 0
  %v60 = vmul.f32 %v55, %v58
  %61 = vadd.xlane.f32.xlu0 %v60
  %v62 = vpop.xlane.xlu0 %61
  %s63 = sld [smem:[#allocation2]]
  %v64 = vstv %s63
  %v65 = vadd.f32 %v62, %v64
  %vm66 = vcmask 7168
  %67 = vst.msk [vmem:[%s5] sm:$0xff] %vm66, %v65
  // Predicated region
  $region22: #{tpu_custom_call.1} parent=0 // pred_check
    _
  $region23: #{tpu_custom_call.1} parent=0 // pred_check_branch
    %69 = sbr.rel (0) target = $region25
  $region24: #{tpu_custom_call.1} parent=0 // pred_region
    _
  $region25: #{tpu_custom_call.1} parent=0 // pred_fallthru
    _
  // Predicated region
  $region26: #{tpu_custom_call.1} parent=0 // pred_check
    _
  $region27: #{tpu_custom_call.1} parent=0 // pred_check_branch
    %71 = sbr.rel (0) target = $region29
  $region28: #{tpu_custom_call.1} parent=0 // pred_region
    _
  $region29: #{tpu_custom_call.1} parent=0 // pred_fallthru
    _

</llo_original>
